<compile_context>
chip_gen: v6e
topology: v6e:2x2x1
jax: 0.10.0
libtpu: 0.0.40
codegen_flags: <defaults>
</compile_context>

<pallas_src>
import functools

import numpy as np

import jax
import jax.numpy as jnp
from jax import lax
from jax.experimental import pallas as pl
from jax.experimental.pallas import tpu as pltpu

EPS = 1e-5  # torch.nn.LayerNorm default


# ----------------------------- helpers --------------------------------------
def _affine_is_identity(gamma, beta):
    """True iff gamma==1 and beta==0 and both are statically known."""
    try:
        g = np.asarray(gamma)
        b = np.asarray(beta)
    except Exception:  # traced values -> cannot decide statically
        return False
    return bool(np.all(g == 1.0)) and bool(np.all(b == 0.0))


def _pick_tile(n, max_tile):
    """Largest tile that exactly divides n, is <= max_tile and sublane-friendly."""
    if n <= max_tile:
        return n
    start = max_tile - (max_tile % 8)
    for t in range(start, 0, -8):  # multiples of 8 keep the (8,128) block rule
        if n % t == 0:
            return t
    return n  # fall back to the full extent (always legal)


def _vmem_limit_bytes(tq, tk, D, itemsize):
    # double-buffered q/k/v/out tiles + f32/native scratch, generous headroom,
    # clamped so it still fits v7x's 64 MiB physical VMEM.
    tiles = (2 * tq * D + 2 * tk * D) * itemsize
    scratch = (2 * tq + tq * D) * 4 + tq * D * itemsize + 2 * D * 4
    est = 4 * tiles + scratch
    return int(min(max(est, 32 * 1024 * 1024), 48 * 1024 * 1024))


def _ln_rows(x, g_ref, b_ref, apply_affine):
    """LayerNorm over the last dim; stats in f32; returns f32 rows."""
    x32 = x.astype(jnp.float32)
    mean = jnp.mean(x32, axis=-1, keepdims=True)
    xc = x32 - mean
    var = jnp.mean(xc * xc, axis=-1, keepdims=True)  # biased, like torch
    xn = xc * lax.rsqrt(var + EPS)
    if apply_affine:
        g = g_ref[0].astype(jnp.float32)
        b = b_ref[0].astype(jnp.float32)
        xn = xn * g[None, :] + b[None, :]
    return xn


# ------------------ fused LN(q,k,v) + cross-attention kernel ----------------
def _fused_prenorm_attn_kernel(q_ref, k_ref, v_ref, g_ref, b_ref, o_ref,
                               qn_sc, m_sc, l_sc, acc_sc, *, scale, apply_affine):
    ki = pl.program_id(2)

    @pl.when(ki == 0)
    def _():
        # LN(q) computed once per (b, q-tile); 1/sqrt(D) is folded in here so
        # the per-k-tile score matrix needs no extra multiply.
        qn = _ln_rows(q_ref[0], g_ref, b_ref, apply_affine) * scale
        qn_sc[...] = qn.astype(qn_sc.dtype)
        m_sc[...] = jnp.full_like(m_sc, -jnp.inf)
        l_sc[...] = jnp.zeros_like(l_sc)
        acc_sc[...] = jnp.zeros_like(acc_sc)

    # Normalize the current K/V tiles in-register; keep matmul operands in the
    # input dtype (bf16 stays bf16 for full-rate MXU), accumulate in f32.
    kn = _ln_rows(k_ref[0], g_ref, b_ref, apply_affine).astype(k_ref.dtype)  # (tk, D)
    vn = _ln_rows(v_ref[0], g_ref, b_ref, apply_affine).astype(v_ref.dtype)  # (tk, D)

    # (scaled Q) @ K^T without an explicit transpose: contract last dims.
    s = lax.dot_general(qn_sc[...], kn, (((1,), (1,)), ((), ())),
                        preferred_element_type=jnp.float32)                  # (tq, tk)

    # Online softmax update.
    m_prev = m_sc[...]
    m_new = jnp.maximum(m_prev, jnp.max(s, axis=-1, keepdims=True))
    alpha = jnp.exp(m_prev - m_new)
    p = jnp.exp(s - m_new)
    l_sc[...] = alpha * l_sc[...] + jnp.sum(p, axis=-1, keepdims=True)
    acc_sc[...] = alpha * acc_sc[...] + jnp.dot(
        p.astype(vn.dtype), vn, preferred_element_type=jnp.float32)
    m_sc[...] = m_new

    @pl.when(ki == pl.num_programs(2) - 1)
    def _():
        inv_l = pl.reciprocal(l_sc[...], approx=True)   # EUP slot, ~free
        o_ref[0] = (acc_sc[...] * inv_l).astype(o_ref.dtype)


def fused_prenorm_cross_attention(q, k, v, gamma, beta, *,
                                  max_q_tile=256, max_k_tile=512):
    """fn(LN(q), LN(k), LN(v)) with fn = scaled-dot cross-attention, one kernel."""
    B, Nq, D = q.shape
    Bk, Nk, Dk = k.shape
    assert k.shape == v.shape and Bk == B and Dk == D

    tq = _pick_tile(Nq, max_q_tile)
    tk = _pick_tile(Nk, max_k_tile)
    scale = 1.0 / float(D) ** 0.5
    apply_affine = not _affine_is_identity(gamma, beta)

    g2 = jnp.asarray(gamma).reshape(1, D)
    b2 = jnp.asarray(beta).reshape(1, D)

    kernel = functools.partial(_fused_prenorm_attn_kernel,
                               scale=scale, apply_affine=apply_affine)

    grid = (B, Nq // tq, Nk // tk)
    return pl.pallas_call(
        kernel,
        out_shape=jax.ShapeDtypeStruct((B, Nq, D), q.dtype),
        grid_spec=pltpu.PrefetchScalarGridSpec(
            num_scalar_prefetch=0,
            grid=grid,
            in_specs=[
                pl.BlockSpec((1, tq, D), lambda b, qi, ki: (b, qi, 0)),   # q
                pl.BlockSpec((1, tk, D), lambda b, qi, ki: (b, ki, 0)),   # k
                pl.BlockSpec((1, tk, D), lambda b, qi, ki: (b, ki, 0)),   # v
                pl.BlockSpec((1, D), lambda b, qi, ki: (0, 0)),           # gamma
                pl.BlockSpec((1, D), lambda b, qi, ki: (0, 0)),           # beta
            ],
            out_specs=pl.BlockSpec((1, tq, D), lambda b, qi, ki: (b, qi, 0)),
            scratch_shapes=[
                pltpu.VMEM((tq, D), q.dtype),       # cached LN(q)*scale
                pltpu.VMEM((tq, 1), jnp.float32),   # running max
                pltpu.VMEM((tq, 1), jnp.float32),   # running denom
                pltpu.VMEM((tq, D), jnp.float32),   # output accumulator
            ],
        ),
        compiler_params=pltpu.CompilerParams(
            dimension_semantics=("parallel", "parallel", "arbitrary"),
            vmem_limit_bytes=_vmem_limit_bytes(tq, tk, D, q.dtype.itemsize),
        ),
    )(q, k, v, g2, b2)


# --------------- standalone LayerNorm kernel (generic-fn fallback) ----------
def _layernorm_kernel(x_ref, g_ref, b_ref, o_ref, *, apply_affine):
    o_ref[0] = _ln_rows(x_ref[0], g_ref, b_ref, apply_affine).astype(o_ref.dtype)


def pallas_layernorm(x, gamma, beta):
    B, N, D = x.shape
    g2 = jnp.asarray(gamma).reshape(1, D)
    b2 = jnp.asarray(beta).reshape(1, D)
    apply_affine = not _affine_is_identity(gamma, beta)
    kernel = functools.partial(_layernorm_kernel, apply_affine=apply_affine)
    return pl.pallas_call(
        kernel,
        out_shape=jax.ShapeDtypeStruct((B, N, D), x.dtype),
        grid_spec=pltpu.PrefetchScalarGridSpec(
            num_scalar_prefetch=0,
            grid=(B,),
            in_specs=[
                pl.BlockSpec((1, N, D), lambda b: (b, 0, 0)),
                pl.BlockSpec((1, D), lambda b: (0, 0)),
                pl.BlockSpec((1, D), lambda b: (0, 0)),
            ],
            out_specs=pl.BlockSpec((1, N, D), lambda b: (b, 0, 0)),
        ),
        compiler_params=pltpu.CompilerParams(dimension_semantics=("parallel",)),
    )(x, g2, b2)


# ------------------------------- MulPreNorm ---------------------------------
class MulPreNorm:
    """JAX/Pallas port of lttr MulPreNorm: fn(LN(q), LN(k), LN(v)).

    fn=None selects the fused Pallas LN + cross-attention kernel (the typical
    fn inside fusion_transformer.py). Any other fn uses the Pallas LayerNorm
    followed by fn (non-fused fallback).
    """

    def __init__(self, dim, fn=None):
        # nn.LayerNorm(dim) default init: weight = ones, bias = zeros.
        self.gamma = jnp.ones((dim,), dtype=jnp.float32)
        self.beta = jnp.zeros((dim,), dtype=jnp.float32)
        self.fn = fn

    def __call__(self, query, key, value, **kwargs):
        if self.fn is None:
            return fused_prenorm_cross_attention(
                query, key, value, self.gamma, self.beta, **kwargs)
        # TODO(synk): arbitrary user fn cannot be fused into the kernel; fall
        # back to Pallas LayerNorm + fn.
        q = pallas_layernorm(query, self.gamma, self.beta)
        k = pallas_layernorm(key, self.gamma, self.beta)
        v = pallas_layernorm(value, self.gamma, self.beta)
        return self.fn(q, k, v, **kwargs)


# ------------------------------ reference (JAX) ------------------------------
def _ref_layernorm(x, gamma, beta):
    x32 = x.astype(jnp.float32)
    mean = jnp.mean(x32, axis=-1, keepdims=True)
    var = jnp.mean((x32 - mean) ** 2, axis=-1, keepdims=True)
    return ((x32 - mean) / jnp.sqrt(var + EPS)) * gamma + beta


def _ref_attention(q, k, v):
    D = q.shape[-1]
    s = jnp.einsum("bqd,bkd->bqk", q, k) / (D ** 0.5)
    p = jax.nn.softmax(s, axis=-1)
    return jnp.einsum("bqk,bkd->bqd", p, v)


if __name__ == "__main__":
    B, N, D = 2, 8, 32
    key0 = jax.random.PRNGKey(0)
    kq, kk, kv = jax.random.split(key0, 3)
    query = jax.random.normal(kq, (B, N, D), dtype=jnp.float32)
    key_t = jax.random.normal(kk, (B, N, D), dtype=jnp.float32)
    value = jax.random.normal(kv, (B, N, D), dtype=jnp.float32)

    module = MulPreNorm(D)  # fn=None -> fused LN + cross-attention Pallas kernel
    out = jax.block_until_ready(module(query, key_t, value))

    ref = _ref_attention(
        _ref_layernorm(query, module.gamma, module.beta),
        _ref_layernorm(key_t, module.gamma, module.beta),
        _ref_layernorm(value, module.gamma, module.beta),
    )
    assert out.shape == (B, N, D)
    assert jnp.allclose(out, ref, atol=2e-3, rtol=2e-3), "mismatch vs reference"

    # Exercise the multi-k-tile online-softmax path (grid ki > 1) as well.
    N2 = 16
    q2 = jax.random.normal(kq, (B, N2, D), dtype=jnp.float32)
    k2 = jax.random.normal(kk, (B, N2, D), dtype=jnp.float32)
    v2 = jax.random.normal(kv, (B, N2, D), dtype=jnp.float32)
    out2 = jax.block_until_ready(
        fused_prenorm_cross_attention(q2, k2, v2, module.gamma, module.beta,
                                      max_q_tile=8, max_k_tile=8))
    ref2 = _ref_attention(
        _ref_layernorm(q2, module.gamma, module.beta),
        _ref_layernorm(k2, module.gamma, module.beta),
        _ref_layernorm(v2, module.gamma, module.beta),
    )
    assert jnp.allclose(out2, ref2, atol=2e-3, rtol=2e-3), "tiled mismatch vs reference"

    print("KERNEL_OK")
</pallas_src>

<mosaic_0001>
module attributes {stable_mosaic.version = 11 : i64} {
  func.func @_fused_prenorm_attn_kernel(%arg0: i32, %arg1: i32, %arg2: i32, %arg3: memref<1x8x32xf32, #tpu.memory_space<vmem>>, %arg4: memref<1x8x32xf32, #tpu.memory_space<vmem>>, %arg5: memref<1x8x32xf32, #tpu.memory_space<vmem>>, %arg6: memref<1x32xf32, #tpu.memory_space<vmem>>, %arg7: memref<1x32xf32, #tpu.memory_space<vmem>>, %arg8: memref<1x8x32xf32, #tpu.memory_space<vmem>>, %arg9: memref<8x32xf32, #tpu.memory_space<vmem>>, %arg10: memref<8x1xf32, #tpu.memory_space<vmem>>, %arg11: memref<8x1xf32, #tpu.memory_space<vmem>>, %arg12: memref<8x32xf32, #tpu.memory_space<vmem>>) attributes {dimension_semantics = [#tpu.dimension_semantics<parallel>, #tpu.dimension_semantics<parallel>, #tpu.dimension_semantics<arbitrary>], iteration_bounds = array<i64: 2, 1, 1>, scalar_prefetch = 0 : i64, scratch_operands = 4 : i64, tpu.core_type = #tpu.core_type<tc>, window_params = [{transform_indices = @transform_0, window_bounds = array<i64: 1, 8, 32>}, {transform_indices = @transform_1, window_bounds = array<i64: 1, 8, 32>}, {transform_indices = @transform_2, window_bounds = array<i64: 1, 8, 32>}, {pipeline_mode = #tpu.pipeline_mode<synchronous>, transform_indices = @transform_3, window_bounds = array<i64: 1, 32>}, {pipeline_mode = #tpu.pipeline_mode<synchronous>, transform_indices = @transform_4, window_bounds = array<i64: 1, 32>}, {transform_indices = @transform_5, window_bounds = array<i64: 1, 8, 32>}]} {
    %c0_i32 = arith.constant 0 : i32
    %0 = arith.cmpi eq, %arg2, %c0_i32 : i32
    %1 = arith.extui %0 : i1 to i32
    %c0_i32_0 = arith.constant 0 : i32
    %2 = arith.cmpi ne, %1, %c0_i32_0 : i32
    scf.if %2 {
      %c0_35 = arith.constant 0 : index
      %c0_36 = arith.constant 0 : index
      %c0_37 = arith.constant 0 : index
      %66 = vector.load %arg3[%c0_35, %c0_36, %c0_37] : memref<1x8x32xf32, #tpu.memory_space<vmem>>, vector<1x8x32xf32>
      %67 = vector.shape_cast %66 : vector<1x8x32xf32> to vector<8x32xf32>
      %cst_38 = arith.constant dense<0.000000e+00> : vector<8xf32>
      %68 = vector.multi_reduction <add>, %67, %cst_38 [1] : vector<8x32xf32> to vector<8xf32>
      %69 = vector.shape_cast %68 : vector<8xf32> to vector<8x1xf32>
      %cst_39 = arith.constant 3.200000e+01 : f32
      %70 = vector.broadcast %cst_39 : f32 to vector<8x1xf32>
      %71 = arith.divf %69, %70 : vector<8x1xf32>
      %72 = vector.broadcast %71 : vector<8x1xf32> to vector<8x32xf32>
      %73 = arith.subf %67, %72 : vector<8x32xf32>
      %74 = arith.mulf %73, %73 : vector<8x32xf32>
      %cst_40 = arith.constant dense<0.000000e+00> : vector<8xf32>
      %75 = vector.multi_reduction <add>, %74, %cst_40 [1] : vector<8x32xf32> to vector<8xf32>
      %76 = vector.shape_cast %75 : vector<8xf32> to vector<8x1xf32>
      %cst_41 = arith.constant 3.200000e+01 : f32
      %77 = vector.broadcast %cst_41 : f32 to vector<8x1xf32>
      %78 = arith.divf %76, %77 : vector<8x1xf32>
      %cst_42 = arith.constant 9.99999974E-6 : f32
      %79 = vector.broadcast %cst_42 : f32 to vector<8x1xf32>
      %80 = arith.addf %78, %79 : vector<8x1xf32>
      %81 = math.rsqrt %80 : vector<8x1xf32>
      %82 = vector.broadcast %81 : vector<8x1xf32> to vector<8x32xf32>
      %83 = arith.mulf %73, %82 : vector<8x32xf32>
      %cst_43 = arith.constant 0.176776692 : f32
      %84 = vector.broadcast %cst_43 : f32 to vector<8x32xf32>
      %85 = arith.mulf %83, %84 : vector<8x32xf32>
      %c0_44 = arith.constant 0 : index
      %c0_45 = arith.constant 0 : index
      %86 = vector.load %arg9[%c0_44, %c0_45] : memref<8x32xf32, #tpu.memory_space<vmem>>, vector<8x32xf32>
      tpu.vector_store %arg9[%c0_44, %c0_45], %85 {strides = array<i32>} : memref<8x32xf32, #tpu.memory_space<vmem>>, vector<8x32xf32>,
      %cst_46 = arith.constant 0xFF800000 : f32
      %87 = vector.broadcast %cst_46 : f32 to vector<8x1xf32>
      %c0_47 = arith.constant 0 : index
      %c0_48 = arith.constant 0 : index
      %88 = vector.load %arg10[%c0_47, %c0_48] : memref<8x1xf32, #tpu.memory_space<vmem>>, vector<8x1xf32>
      tpu.vector_store %arg10[%c0_47, %c0_48], %87 {strides = array<i32>} : memref<8x1xf32, #tpu.memory_space<vmem>>, vector<8x1xf32>,
      %cst_49 = arith.constant 0.000000e+00 : f32
      %89 = vector.broadcast %cst_49 : f32 to vector<8x1xf32>
      %c0_50 = arith.constant 0 : index
      %c0_51 = arith.constant 0 : index
      %90 = vector.load %arg11[%c0_50, %c0_51] : memref<8x1xf32, #tpu.memory_space<vmem>>, vector<8x1xf32>
      tpu.vector_store %arg11[%c0_50, %c0_51], %89 {strides = array<i32>} : memref<8x1xf32, #tpu.memory_space<vmem>>, vector<8x1xf32>,
      %cst_52 = arith.constant 0.000000e+00 : f32
      %91 = vector.broadcast %cst_52 : f32 to vector<8x32xf32>
      %c0_53 = arith.constant 0 : index
      %c0_54 = arith.constant 0 : index
      %92 = vector.load %arg12[%c0_53, %c0_54] : memref<8x32xf32, #tpu.memory_space<vmem>>, vector<8x32xf32>
      tpu.vector_store %arg12[%c0_53, %c0_54], %91 {strides = array<i32>} : memref<8x32xf32, #tpu.memory_space<vmem>>, vector<8x32xf32>,
    } else {
    }
    %c0 = arith.constant 0 : index
    %c0_1 = arith.constant 0 : index
    %c0_2 = arith.constant 0 : index
    %3 = vector.load %arg4[%c0, %c0_1, %c0_2] : memref<1x8x32xf32, #tpu.memory_space<vmem>>, vector<1x8x32xf32>
    %4 = vector.shape_cast %3 : vector<1x8x32xf32> to vector<8x32xf32>
    %cst = arith.constant dense<0.000000e+00> : vector<8xf32>
    %5 = vector.multi_reduction <add>, %4, %cst [1] : vector<8x32xf32> to vector<8xf32>
    %6 = vector.shape_cast %5 : vector<8xf32> to vector<8x1xf32>
    %cst_3 = arith.constant 3.200000e+01 : f32
    %7 = vector.broadcast %cst_3 : f32 to vector<8x1xf32>
    %8 = arith.divf %6, %7 : vector<8x1xf32>
    %9 = vector.broadcast %8 : vector<8x1xf32> to vector<8x32xf32>
    %10 = arith.subf %4, %9 : vector<8x32xf32>
    %11 = arith.mulf %10, %10 : vector<8x32xf32>
    %cst_4 = arith.constant dense<0.000000e+00> : vector<8xf32>
    %12 = vector.multi_reduction <add>, %11, %cst_4 [1] : vector<8x32xf32> to vector<8xf32>
    %13 = vector.shape_cast %12 : vector<8xf32> to vector<8x1xf32>
    %cst_5 = arith.constant 3.200000e+01 : f32
    %14 = vector.broadcast %cst_5 : f32 to vector<8x1xf32>
    %15 = arith.divf %13, %14 : vector<8x1xf32>
    %cst_6 = arith.constant 9.99999974E-6 : f32
    %16 = vector.broadcast %cst_6 : f32 to vector<8x1xf32>
    %17 = arith.addf %15, %16 : vector<8x1xf32>
    %18 = math.rsqrt %17 : vector<8x1xf32>
    %19 = vector.broadcast %18 : vector<8x1xf32> to vector<8x32xf32>
    %20 = arith.mulf %10, %19 : vector<8x32xf32>
    %c0_7 = arith.constant 0 : index
    %c0_8 = arith.constant 0 : index
    %c0_9 = arith.constant 0 : index
    %21 = vector.load %arg5[%c0_7, %c0_8, %c0_9] : memref<1x8x32xf32, #tpu.memory_space<vmem>>, vector<1x8x32xf32>
    %22 = vector.shape_cast %21 : vector<1x8x32xf32> to vector<8x32xf32>
    %cst_10 = arith.constant dense<0.000000e+00> : vector<8xf32>
    %23 = vector.multi_reduction <add>, %22, %cst_10 [1] : vector<8x32xf32> to vector<8xf32>
    %24 = vector.shape_cast %23 : vector<8xf32> to vector<8x1xf32>
    %cst_11 = arith.constant 3.200000e+01 : f32
    %25 = vector.broadcast %cst_11 : f32 to vector<8x1xf32>
    %26 = arith.divf %24, %25 : vector<8x1xf32>
    %27 = vector.broadcast %26 : vector<8x1xf32> to vector<8x32xf32>
    %28 = arith.subf %22, %27 : vector<8x32xf32>
    %29 = arith.mulf %28, %28 : vector<8x32xf32>
    %cst_12 = arith.constant dense<0.000000e+00> : vector<8xf32>
    %30 = vector.multi_reduction <add>, %29, %cst_12 [1] : vector<8x32xf32> to vector<8xf32>
    %31 = vector.shape_cast %30 : vector<8xf32> to vector<8x1xf32>
    %cst_13 = arith.constant 3.200000e+01 : f32
    %32 = vector.broadcast %cst_13 : f32 to vector<8x1xf32>
    %33 = arith.divf %31, %32 : vector<8x1xf32>
    %cst_14 = arith.constant 9.99999974E-6 : f32
    %34 = vector.broadcast %cst_14 : f32 to vector<8x1xf32>
    %35 = arith.addf %33, %34 : vector<8x1xf32>
    %36 = math.rsqrt %35 : vector<8x1xf32>
    %37 = vector.broadcast %36 : vector<8x1xf32> to vector<8x32xf32>
    %38 = arith.mulf %28, %37 : vector<8x32xf32>
    %c0_15 = arith.constant 0 : index
    %c0_16 = arith.constant 0 : index
    %39 = vector.load %arg9[%c0_15, %c0_16] : memref<8x32xf32, #tpu.memory_space<vmem>>, vector<8x32xf32>
    %cst_17 = arith.constant dense<0.000000e+00> : vector<8x8xf32>
    %40 = tpu.matmul %39, %20, %cst_17 {dimension_numbers = #tpu.dot_dimension_numbers<[1], [1], [0], [0], [0, 0, 1, 0], [], []>} : vector<8x32xf32>, vector<8x32xf32>, vector<8x8xf32> -> vector<8x8xf32>
    %c0_18 = arith.constant 0 : index
    %c0_19 = arith.constant 0 : index
    %41 = vector.load %arg10[%c0_18, %c0_19] : memref<8x1xf32, #tpu.memory_space<vmem>>, vector<8x1xf32>
    %cst_20 = arith.constant dense<0xFF800000> : vector<8xf32>
    %42 = vector.multi_reduction <maximumf>, %40, %cst_20 [1] : vector<8x8xf32> to vector<8xf32>
    %43 = vector.shape_cast %42 : vector<8xf32> to vector<8x1xf32>
    %44 = arith.maximumf %41, %43 : vector<8x1xf32>
    %45 = arith.subf %41, %44 : vector<8x1xf32>
    %46 = math.exp %45 : vector<8x1xf32>
    %47 = vector.broadcast %44 : vector<8x1xf32> to vector<8x8xf32>
    %48 = arith.subf %40, %47 : vector<8x8xf32>
    %49 = math.exp %48 : vector<8x8xf32>
    %c0_21 = arith.constant 0 : index
    %c0_22 = arith.constant 0 : index
    %50 = vector.load %arg11[%c0_21, %c0_22] : memref<8x1xf32, #tpu.memory_space<vmem>>, vector<8x1xf32>
    %51 = arith.mulf %46, %50 : vector<8x1xf32>
    %cst_23 = arith.constant dense<0.000000e+00> : vector<8xf32>
    %52 = vector.multi_reduction <add>, %49, %cst_23 [1] : vector<8x8xf32> to vector<8xf32>
    %53 = vector.shape_cast %52 : vector<8xf32> to vector<8x1xf32>
    %54 = arith.addf %51, %53 : vector<8x1xf32>
    %c0_24 = arith.constant 0 : index
    %c0_25 = arith.constant 0 : index
    %55 = vector.load %arg11[%c0_24, %c0_25] : memref<8x1xf32, #tpu.memory_space<vmem>>, vector<8x1xf32>
    tpu.vector_store %arg11[%c0_24, %c0_25], %54 {strides = array<i32>} : memref<8x1xf32, #tpu.memory_space<vmem>>, vector<8x1xf32>,
    %c0_26 = arith.constant 0 : index
    %c0_27 = arith.constant 0 : index
    %56 = vector.load %arg12[%c0_26, %c0_27] : memref<8x32xf32, #tpu.memory_space<vmem>>, vector<8x32xf32>
    %57 = vector.broadcast %46 : vector<8x1xf32> to vector<8x32xf32>
    %58 = arith.mulf %57, %56 : vector<8x32xf32>
    %cst_28 = arith.constant dense<0.000000e+00> : vector<8x32xf32>
    %59 = tpu.matmul %49, %38, %cst_28 {dimension_numbers = #tpu.dot_dimension_numbers<[1], [0], [0], [1], [0, 0, 1, 1], [], []>} : vector<8x8xf32>, vector<8x32xf32>, vector<8x32xf32> -> vector<8x32xf32>
    %60 = arith.addf %58, %59 : vector<8x32xf32>
    %c0_29 = arith.constant 0 : index
    %c0_30 = arith.constant 0 : index
    %61 = vector.load %arg12[%c0_29, %c0_30] : memref<8x32xf32, #tpu.memory_space<vmem>>, vector<8x32xf32>
    tpu.vector_store %arg12[%c0_29, %c0_30], %60 {strides = array<i32>} : memref<8x32xf32, #tpu.memory_space<vmem>>, vector<8x32xf32>,
    %c0_31 = arith.constant 0 : index
    %c0_32 = arith.constant 0 : index
    %62 = vector.load %arg10[%c0_31, %c0_32] : memref<8x1xf32, #tpu.memory_space<vmem>>, vector<8x1xf32>
    tpu.vector_store %arg10[%c0_31, %c0_32], %44 {strides = array<i32>} : memref<8x1xf32, #tpu.memory_space<vmem>>, vector<8x1xf32>,
    %c0_i32_33 = arith.constant 0 : i32
    %63 = arith.cmpi eq, %arg2, %c0_i32_33 : i32
    %64 = arith.extui %63 : i1 to i32
    %c0_i32_34 = arith.constant 0 : i32
    %65 = arith.cmpi ne, %64, %c0_i32_34 : i32
    scf.if %65 {
      %c0_35 = arith.constant 0 : index
      %c0_36 = arith.constant 0 : index
      %66 = vector.load %arg11[%c0_35, %c0_36] : memref<8x1xf32, #tpu.memory_space<vmem>>, vector<8x1xf32>
      %67 = tpu.reciprocal %66 {approx = true} : vector<8x1xf32> -> vector<8x1xf32>
      %c0_37 = arith.constant 0 : index
      %c0_38 = arith.constant 0 : index
      %68 = vector.load %arg12[%c0_37, %c0_38] : memref<8x32xf32, #tpu.memory_space<vmem>>, vector<8x32xf32>
      %69 = vector.broadcast %67 : vector<8x1xf32> to vector<8x32xf32>
      %70 = arith.mulf %68, %69 : vector<8x32xf32>
      %c0_39 = arith.constant 0 : index
      %c0_40 = arith.constant 0 : index
      %c0_41 = arith.constant 0 : index
      %71 = vector.load %arg8[%c0_39, %c0_40, %c0_41] : memref<1x8x32xf32, #tpu.memory_space<vmem>>, vector<1x8x32xf32>
      %72 = vector.shape_cast %71 : vector<1x8x32xf32> to vector<8x32xf32>
      %73 = vector.shape_cast %70 : vector<8x32xf32> to vector<1x8x32xf32>
      tpu.vector_store %arg8[%c0_39, %c0_40, %c0_41], %73 {strides = array<i32>} : memref<1x8x32xf32, #tpu.memory_space<vmem>>, vector<1x8x32xf32>,
    } else {
    }
    return
  }
  func.func @transform_0(%arg0: i32, %arg1: i32, %arg2: i32) -> (i32, i32, i32) {
    %c0_i32 = arith.constant 0 : i32
    %c0_i32_0 = arith.constant 0 : i32
    return %arg0, %arg1, %c0_i32 : i32, i32, i32
  }
  func.func @transform_1(%arg0: i32, %arg1: i32, %arg2: i32) -> (i32, i32, i32) {
    %c0_i32 = arith.constant 0 : i32
    %c0_i32_0 = arith.constant 0 : i32
    return %arg0, %arg2, %c0_i32 : i32, i32, i32
  }
  func.func @transform_2(%arg0: i32, %arg1: i32, %arg2: i32) -> (i32, i32, i32) {
    %c0_i32 = arith.constant 0 : i32
    %c0_i32_0 = arith.constant 0 : i32
    return %arg0, %arg2, %c0_i32 : i32, i32, i32
  }
  func.func @transform_3(%arg0: i32, %arg1: i32, %arg2: i32) -> (i32, i32) {
    %c0_i32 = arith.constant 0 : i32
    %c0_i32_0 = arith.constant 0 : i32
    %c0_i32_1 = arith.constant 0 : i32
    return %c0_i32, %c0_i32_0 : i32, i32
  }
  func.func @transform_4(%arg0: i32, %arg1: i32, %arg2: i32) -> (i32, i32) {
    %c0_i32 = arith.constant 0 : i32
    %c0_i32_0 = arith.constant 0 : i32
    %c0_i32_1 = arith.constant 0 : i32
    return %c0_i32, %c0_i32_0 : i32, i32
  }
  func.func @transform_5(%arg0: i32, %arg1: i32, %arg2: i32) -> (i32, i32, i32) {
    %c0_i32 = arith.constant 0 : i32
    %c0_i32_0 = arith.constant 0 : i32
    return %arg0, %arg1, %c0_i32 : i32, i32, i32
  }
}

</mosaic_0001>

<llo_original>
// kernel: tpu_custom_call.1
$region0: #{tpu_custom_call.1}
  #allocation0 [shape = 'u32[]', space=smem, size = 0x4, offset = 0x4, fixed_abs, tag = 'smem constant byte address 0x4 - core index']
  #allocation1 [shape = 'u32[144,128]{1,0:T(1,128)}', space=vmem, size = 0x12000, scoped, tag = 'internal scratch']
  #allocation2 [shape = 'f32[8,32]{1,0:T(8,128)}', space=vmem, size = 0x1000, scoped, tag = 'scratch operand']
  #allocation3 [shape = 'f32[8,1]{1,0:T(8,128)}', space=vmem, size = 0x1000, scoped, tag = 'scratch operand']
  #allocation4 [shape = 'f32[8,1]{1,0:T(8,128)}', space=vmem, size = 0x1000, scoped, tag = 'scratch operand']
  #allocation5 [shape = 'f32[8,32]{1,0:T(8,128)}', space=vmem, size = 0x1000, scoped, tag = 'scratch operand']
  %s0 = inlined_call_operand.hbm [shape: f32[2,8,32], index: 0, kind: input, shape index: {}]
  %s1 = inlined_call_operand.hbm [shape: f32[2,8,32], index: 1, kind: input, shape index: {}]
  %s2 = inlined_call_operand.hbm [shape: f32[2,8,32], index: 2, kind: input, shape index: {}]
  %s3 = inlined_call_operand.vmem [shape: f32[1,32], index: 3, kind: input, shape index: {}]
  %s4 = inlined_call_operand.vmem [shape: f32[1,32], index: 4, kind: input, shape index: {}]
  %s5 = inlined_call_operand.hbm [shape: f32[2,8,32], index: 5, kind: output, shape index: {}]
  %s6 = sld [smem:[#allocation0]]
  $region73: #{tpu_custom_call.1} parent=0
    _
  %s8 = ssub.s32 1, %s6
  %s9 = scalar_select 0, %s8, %s6
  $region1: #{tpu_custom_call.1} parent=0
    #allocation6 [shape = 'u8[8192]{0}', space=vmem, size = 0x2000, scoped, tag = 'input window, operand 0']
    #allocation7 [shape = 's32[2]{0}', space=sflag, size = 0x8, scoped, tag = 'scoped memory for tpu_custom_call.1']
    #allocation8 [shape = 's32[2]{0}', space=sflag, size = 0x8, scoped, tag = 'scoped memory for tpu_custom_call.1']
    #allocation9 [shape = 'u8[8192]{0}', space=vmem, size = 0x2000, scoped, tag = 'input window, operand 1']
    #allocation10 [shape = 's32[2]{0}', space=sflag, size = 0x8, scoped, tag = 'scoped memory for tpu_custom_call.1']
    #allocation11 [shape = 'u8[8192]{0}', space=vmem, size = 0x2000, scoped, tag = 'input window, operand 2']
    #allocation12 [shape = 'u8[8192]{0}', space=vmem, size = 0x2000, scoped, tag = 'output window, operand 0']
    %10 = vsyncpa [#allocation7], 0
    %s11 = scalar_lea.sflag [#allocation7], 1
    %12 = vsyncpa %s11, 0
    %13 = vsyncpa [#allocation10], 0
    %s14 = scalar_lea.sflag [#allocation10], 1
    %15 = vsyncpa %s14, 0
    %16 = vsyncpa [#allocation8], 0
    %s17 = scalar_lea.sflag [#allocation8], 1
    %18 = vsyncpa %s17, 0
    loop: start=0, step=1, limit=4
    $region2: #{tpu_custom_call.1} parent=1 // loop_pre_header
      _
    $region3: #{tpu_custom_call.1} parent=1 // loop_header
      %s20 = sphi 0, %s24
      %p21 = scmp.ge.s32.totalorder %s20, 4
      %s27 = sphi 0, %s46
      %s28 = sphi 0, %s42
      %s29 = sphi 0, %s38
      %s30 = sphi 0, %s27
      %s31 = sphi 0, %s28
      %s32 = sphi 0, %s29
      %s33 = sphi 0, %s30
      %s34 = sphi 0, %s31
      %s35 = sphi 0, %s32
      %s51 = sphi 0, %s53
      %s54 = sphi 0, %s51
      %s55 = sphi 0, %s54
      %s71 = sphi 0, %s55
      %s79 = sphi 0, %s81
      %s82 = sphi 0, %s79
      %s83 = sphi 0, %s82
      %s99 = sphi 0, %s83
      %s107 = sphi 0, %s109
      %s110 = sphi 0, %s107
      %s111 = sphi 0, %s110
      %s127 = sphi 0, %s111
      %s131 = sphi 0, %s131
      %s133 = sphi 0, %s131
      %s134 = sphi 0, %s133
      %s148 = sphi 0, %s134
      %s152 = sphi 0, %s152
      %s154 = sphi 0, %s152
      %s155 = sphi 0, %s154
      %s169 = sphi 0, %s155
      %s177 = sphi 0, %s179
      %s180 = sphi 0, %s177
      %s181 = sphi 0, %s180
      %s197 = sphi 0, %s181
    $region4: #{tpu_custom_call.1} parent=1 // loop_header_branch
      %23 = sbr.rel (%p21) target = $region8
    $region5: #{tpu_custom_call.1} parent=1 // loop_body
      %s25 = ssub.s32 %s20, 1
      %s26 = ssub.s32 %s20, 2
      %s36 = sadd.s32 1, %s29
      %p37 = scmp.ge.s32.totalorder %s36, 1
      %s38 = scalar_select %p37, 0, %s36
      %s39 = sadd.s32 1, %s28
      %s40 = scalar_select %p37, %s39, %s28
      %p41 = scmp.ge.s32.totalorder %s40, 1
      %s42 = scalar_select %p41, 0, %s40
      %s43 = sadd.s32 1, %s27
      %s44 = scalar_select %p41, %s43, %s27
      %p45 = scmp.ge.s32.totalorder %s44, 2
      %s46 = scalar_select %p45, 0, %s44
      %s47 = ssub.s32 %s27, %s46
      %s48 = ssub.s32 %s28, %s42
      %s49 = sor.u32 %s47, %s48
      %p50 = scmp.eq.s32.totalorder %s49, 0
      %s52 = sadd.s32 %s51, 1
      %s53 = scalar_select %p50, %s51, %s52
      %p56 = pneg %p50
      %p57 = scmp.eq.s32.totalorder %s20, 1
      %p58 = por %p56, %p57
      %p59 = scmp.ne.s32.totalorder %s51, %s54
      %p60 = scmp.eq.s32.totalorder %s20, 0
      %p61 = por %p59, %p60
      %p62 = scmp.ne.s32.totalorder %s51, %s54
      %p63 = scmp.eq.s32.totalorder %s25, 1
      %p64 = por %p62, %p63
      %p65 = scmp.ne.s32.totalorder %s54, %s55
      %p66 = scmp.eq.s32.totalorder %s25, 0
      %p67 = por %p65, %p66
      %p68 = scmp.ne.s32.totalorder %s54, %s55
      %p69 = scmp.eq.s32.totalorder %s26, 1
      %p70 = por %p68, %p69
      %p72 = scmp.ne.s32.totalorder %s55, %s71
      %p73 = scmp.eq.s32.totalorder %s26, 0
      %p74 = por %p72, %p73
      %s75 = ssub.s32 %s27, %s46
      %s76 = ssub.s32 %s29, %s38
      %s77 = sor.u32 %s75, %s76
      %p78 = scmp.eq.s32.totalorder %s77, 0
      %s80 = sadd.s32 %s79, 1
      %s81 = scalar_select %p78, %s79, %s80
      %p84 = pneg %p78
      %p85 = scmp.eq.s32.totalorder %s20, 1
      %p86 = por %p84, %p85
      %p87 = scmp.ne.s32.totalorder %s79, %s82
      %p88 = scmp.eq.s32.totalorder %s20, 0
      %p89 = por %p87, %p88
      %p90 = scmp.ne.s32.totalorder %s79, %s82
      %p91 = scmp.eq.s32.totalorder %s25, 1
      %p92 = por %p90, %p91
      %p93 = scmp.ne.s32.totalorder %s82, %s83
      %p94 = scmp.eq.s32.totalorder %s25, 0
      %p95 = por %p93, %p94
      %p96 = scmp.ne.s32.totalorder %s82, %s83
      %p97 = scmp.eq.s32.totalorder %s26, 1
      %p98 = por %p96, %p97
      %p100 = scmp.ne.s32.totalorder %s83, %s99
      %p101 = scmp.eq.s32.totalorder %s26, 0
      %p102 = por %p100, %p101
      %s103 = ssub.s32 %s27, %s46
      %s104 = ssub.s32 %s29, %s38
      %s105 = sor.u32 %s103, %s104
      %p106 = scmp.eq.s32.totalorder %s105, 0
      %s108 = sadd.s32 %s107, 1
      %s109 = scalar_select %p106, %s107, %s108
      %p112 = pneg %p106
      %p113 = scmp.eq.s32.totalorder %s20, 1
      %p114 = por %p112, %p113
      %p115 = scmp.ne.s32.totalorder %s107, %s110
      %p116 = scmp.eq.s32.totalorder %s20, 0
      %p117 = por %p115, %p116
      %p118 = scmp.ne.s32.totalorder %s107, %s110
      %p119 = scmp.eq.s32.totalorder %s25, 1
      %p120 = por %p118, %p119
      %p121 = scmp.ne.s32.totalorder %s110, %s111
      %p122 = scmp.eq.s32.totalorder %s25, 0
      %p123 = por %p121, %p122
      %p124 = scmp.ne.s32.totalorder %s110, %s111
      %p125 = scmp.eq.s32.totalorder %s26, 1
      %p126 = por %p124, %p125
      %p128 = scmp.ne.s32.totalorder %s111, %s127
      %p129 = scmp.eq.s32.totalorder %s26, 0
      %p130 = por %p128, %p129
      %s132 = sadd.s32 %s131, 1
      %p135 = scmp.eq.s32.totalorder %s20, 1
      %p136 = scmp.ne.s32.totalorder %s131, %s133
      %p137 = scmp.eq.s32.totalorder %s20, 0
      %p138 = por %p136, %p137
      %p139 = scmp.ne.s32.totalorder %s131, %s133
      %p140 = scmp.eq.s32.totalorder %s25, 1
      %p141 = por %p139, %p140
      %p142 = scmp.ne.s32.totalorder %s133, %s134
      %p143 = scmp.eq.s32.totalorder %s25, 0
      %p144 = por %p142, %p143
      %p145 = scmp.ne.s32.totalorder %s133, %s134
      %p146 = scmp.eq.s32.totalorder %s26, 1
      %p147 = por %p145, %p146
      %p149 = scmp.ne.s32.totalorder %s134, %s148
      %p150 = scmp.eq.s32.totalorder %s26, 0
      %p151 = por %p149, %p150
      %s153 = sadd.s32 %s152, 1
      %p156 = scmp.eq.s32.totalorder %s20, 1
      %p157 = scmp.ne.s32.totalorder %s152, %s154
      %p158 = scmp.eq.s32.totalorder %s20, 0
      %p159 = por %p157, %p158
      %p160 = scmp.ne.s32.totalorder %s152, %s154
      %p161 = scmp.eq.s32.totalorder %s25, 1
      %p162 = por %p160, %p161
      %p163 = scmp.ne.s32.totalorder %s154, %s155
      %p164 = scmp.eq.s32.totalorder %s25, 0
      %p165 = por %p163, %p164
      %p166 = scmp.ne.s32.totalorder %s154, %s155
      %p167 = scmp.eq.s32.totalorder %s26, 1
      %p168 = por %p166, %p167
      %p170 = scmp.ne.s32.totalorder %s155, %s169
      %p171 = scmp.eq.s32.totalorder %s26, 0
      %p172 = por %p170, %p171
      %s173 = ssub.s32 %s27, %s46
      %s174 = ssub.s32 %s28, %s42
      %s175 = sor.u32 %s173, %s174
      %p176 = scmp.eq.s32.totalorder %s175, 0
      %s178 = sadd.s32 %s177, 1
      %s179 = scalar_select %p176, %s177, %s178
      %p182 = pneg %p176
      %p183 = scmp.eq.s32.totalorder %s20, 1
      %p184 = por %p182, %p183
      %p185 = scmp.ne.s32.totalorder %s177, %s180
      %p186 = scmp.eq.s32.totalorder %s20, 0
      %p187 = por %p185, %p186
      %p188 = scmp.ne.s32.totalorder %s177, %s180
      %p189 = scmp.eq.s32.totalorder %s25, 1
      %p190 = por %p188, %p189
      %p191 = scmp.ne.s32.totalorder %s180, %s181
      %p192 = scmp.eq.s32.totalorder %s25, 0
      %p193 = por %p191, %p192
      %p194 = scmp.ne.s32.totalorder %s180, %s181
      %p195 = scmp.eq.s32.totalorder %s26, 1
      %p196 = por %p194, %p195
      %p198 = scmp.ne.s32.totalorder %s181, %s197
      %p199 = scmp.eq.s32.totalorder %s26, 0
      %p200 = por %p198, %p199
      %p201 = scmp.le.s32.totalorder 1, %s20
      %p202 = scmp.lt.s32.totalorder %s20, 3
      %p203 = pnand %p201, %p202
      %p204 = pneg %p203
      // Predicated region
      $region9: #{tpu_custom_call.1} parent=5 // pred_check
        _
      $region10: #{tpu_custom_call.1} parent=5 // pred_check_branch
        %206 = sbr.rel (%p203) target = $region12
      $region11: #{tpu_custom_call.1} parent=5 // pred_region
        %s207 = ssub.s32 %s20, 1
        // Predicated region
        $region13: #{tpu_custom_call.1} parent=11 // pred_check
          %p208 = pneg %p144
        $region14: #{tpu_custom_call.1} parent=11 // pred_check_branch
          %210 = sbr.rel (%p208) target = $region16
        $region15: #{tpu_custom_call.1} parent=11 // pred_region
          _
        $region16: #{tpu_custom_call.1} parent=11 // pred_fallthru
          _
        // Predicated region
        $region17: #{tpu_custom_call.1} parent=11 // pred_check
          %p211 = pneg %p165
        $region18: #{tpu_custom_call.1} parent=11 // pred_check_branch
          %213 = sbr.rel (%p211) target = $region20
        $region19: #{tpu_custom_call.1} parent=11 // pred_region
          _
        $region20: #{tpu_custom_call.1} parent=11 // pred_fallthru
          _
      $region12: #{tpu_custom_call.1} parent=5 // pred_fallthru
        _
      %p214 = scmp.lt.s32.totalorder %s20, 2
      // Predicated region
      $region21: #{tpu_custom_call.1} parent=5 // pred_check
        %p215 = pneg %p214
      $region22: #{tpu_custom_call.1} parent=5 // pred_check_branch
        %217 = sbr.rel (%p215) target = $region24
      $region23: #{tpu_custom_call.1} parent=5 // pred_region
        // Predicated region
        $region25: #{tpu_custom_call.1} parent=23 // pred_check
          %p218 = pneg %p61
        $region26: #{tpu_custom_call.1} parent=23 // pred_check_branch
          %220 = sbr.rel (%p218) target = $region28
        $region27: #{tpu_custom_call.1} parent=23 // pred_region
          %s221 = sand.u32 %s51, 1
          %s222 = scalar_lea.sflag [#allocation7], %s221
          %s223 = sand.u32 %s51, 1
          %s224 = smul.addr %s223, 8
          %s225 = scalar_lea.vmem [#allocation6], %s224
          %s227 = ssub.s32 128, 128
          %228 = vsyncadd %s222, %s227
          %s229 = sadd.s32 %s28, %s27
          %s230 = smul.addr %s229, 128
          %s231 = scalar_lea.hbm %s0, %s230
          %s233 = sshll.u32 %s225, 4
          %s234 = int_to_ptr.vmem [resolvable:$true] %s233
          %236 = dma.hbm_to_vmem [thread:$0]  %s231, 128, %s234, %s222
        $region28: #{tpu_custom_call.1} parent=23 // pred_fallthru
          _
        // Predicated region
        $region29: #{tpu_custom_call.1} parent=23 // pred_check
          %p237 = pneg %p89
        $region30: #{tpu_custom_call.1} parent=23 // pred_check_branch
          %239 = sbr.rel (%p237) target = $region32
        $region31: #{tpu_custom_call.1} parent=23 // pred_region
          %s240 = sand.u32 %s20, 1
          %s241 = scalar_lea.sflag [#allocation10], %s240
          %s242 = sand.u32 %s79, 1
          %s243 = smul.addr %s242, 8
          %s244 = scalar_lea.vmem [#allocation9], %s243
          %s246 = ssub.s32 128, 128
          %247 = vsyncadd %s241, %s246
          %s248 = sadd.s32 %s29, %s27
          %s249 = smul.addr %s248, 128
          %s250 = scalar_lea.hbm %s1, %s249
          %s252 = sshll.u32 %s244, 4
          %s253 = int_to_ptr.vmem [resolvable:$true] %s252
          %255 = dma.hbm_to_vmem [thread:$0]  %s250, 128, %s253, %s241
        $region32: #{tpu_custom_call.1} parent=23 // pred_fallthru
          _
        // Predicated region
        $region33: #{tpu_custom_call.1} parent=23 // pred_check
          %p256 = pneg %p117
        $region34: #{tpu_custom_call.1} parent=23 // pred_check_branch
          %258 = sbr.rel (%p256) target = $region36
        $region35: #{tpu_custom_call.1} parent=23 // pred_region
          %s259 = sand.u32 %s20, 1
          %s260 = scalar_lea.sflag [#allocation10], %s259
          %s261 = sand.u32 %s107, 1
          %s262 = smul.addr %s261, 8
          %s263 = scalar_lea.vmem [#allocation11], %s262
          %s265 = ssub.s32 128, 128
          %266 = vsyncadd %s260, %s265
          %s267 = sadd.s32 %s29, %s27
          %s268 = smul.addr %s267, 128
          %s269 = scalar_lea.hbm %s2, %s268
          %s271 = sshll.u32 %s263, 4
          %s272 = int_to_ptr.vmem [resolvable:$true] %s271
          %274 = dma.hbm_to_vmem [thread:$0]  %s269, 128, %s272, %s260
        $region36: #{tpu_custom_call.1} parent=23 // pred_fallthru
          _
      $region24: #{tpu_custom_call.1} parent=5 // pred_fallthru
        _
      %p275 = scmp.le.s32.totalorder 1, %s20
      %p276 = scmp.lt.s32.totalorder %s20, 3
      %p277 = pnand %p275, %p276
      %p278 = pneg %p277
      // Predicated region
      $region37: #{tpu_custom_call.1} parent=5 // pred_check
        _
      $region38: #{tpu_custom_call.1} parent=5 // pred_check_branch
        %280 = sbr.rel (%p277) target = $region40
      $region39: #{tpu_custom_call.1} parent=5 // pred_region
        %s281 = ssub.s32 %s20, 1
        %s282 = sand.u32 %s54, 1
        %s283 = scalar_lea.sflag [#allocation7], %s282
        %s284 = sand.u32 %s54, 1
        %s285 = smul.addr %s284, 8
        %s286 = scalar_lea.vmem [#allocation6], %s285
        // Predicated region
        $region41: #{tpu_custom_call.1} parent=39 // pred_check
          %p287 = pneg %p67
        $region42: #{tpu_custom_call.1} parent=39 // pred_check_branch
          %289 = sbr.rel (%p287) target = $region44
        $region43: #{tpu_custom_call.1} parent=39 // pred_region
          %290 = dma.done %s283, 128
        $region44: #{tpu_custom_call.1} parent=39 // pred_fallthru
          _
        %s291 = sand.u32 %s25, 1
        %s292 = scalar_lea.sflag [#allocation10], %s291
        %s293 = sand.u32 %s82, 1
        %s294 = smul.addr %s293, 8
        %s295 = scalar_lea.vmem [#allocation9], %s294
        // Predicated region
        $region45: #{tpu_custom_call.1} parent=39 // pred_check
          %p296 = pneg %p95
        $region46: #{tpu_custom_call.1} parent=39 // pred_check_branch
          %298 = sbr.rel (%p296) target = $region48
        $region47: #{tpu_custom_call.1} parent=39 // pred_region
          %299 = dma.done %s292, 128
        $region48: #{tpu_custom_call.1} parent=39 // pred_fallthru
          _
        %s300 = sand.u32 %s25, 1
        %s301 = scalar_lea.sflag [#allocation10], %s300
        %s302 = sand.u32 %s110, 1
        %s303 = smul.addr %s302, 8
        %s304 = scalar_lea.vmem [#allocation11], %s303
        // Predicated region
        $region49: #{tpu_custom_call.1} parent=39 // pred_check
          %p305 = pneg %p123
        $region50: #{tpu_custom_call.1} parent=39 // pred_check_branch
          %307 = sbr.rel (%p305) target = $region52
        $region51: #{tpu_custom_call.1} parent=39 // pred_region
          %308 = dma.done %s301, 128
        $region52: #{tpu_custom_call.1} parent=39 // pred_fallthru
          _
        %s309 = sand.u32 %s54, 1
        %s310 = scalar_lea.sflag [#allocation7], %s309
        %s311 = sand.u32 %s54, 1
        %s312 = smul.addr %s311, 8
        %s313 = scalar_lea.vmem [#allocation6], %s312
        %p314 = pneg %p67
        %p315 = pneg %p64
        %s316 = sand.u32 %s25, 1
        %s317 = scalar_lea.sflag [#allocation10], %s316
        %s318 = sand.u32 %s82, 1
        %s319 = smul.addr %s318, 8
        %s320 = scalar_lea.vmem [#allocation9], %s319
        %p321 = pneg %p95
        %p322 = pneg %p92
        %s323 = sand.u32 %s25, 1
        %s324 = scalar_lea.sflag [#allocation10], %s323
        %s325 = sand.u32 %s110, 1
        %s326 = smul.addr %s325, 8
        %s327 = scalar_lea.vmem [#allocation11], %s326
        %p328 = pneg %p123
        %p329 = pneg %p120
        %p330 = pneg %p144
        %p331 = pneg %p141
        %p332 = pneg %p165
        %p333 = pneg %p162
        %p334 = pneg %p193
        %p335 = pneg %p190
        %s336 = sand.u32 %s180, 1
        %s337 = scalar_lea.sflag [#allocation8], %s336
        %s338 = sand.u32 %s180, 1
        %s339 = smul.addr %s338, 8
        %s340 = scalar_lea.vmem [#allocation12], %s339
        %p341 = scmp.eq.s32.totalorder %s32, 0
        // Predicated region
        $region53: #{tpu_custom_call.1} parent=39 // pred_check
          %p342 = pneg %p341
        $region54: #{tpu_custom_call.1} parent=39 // pred_check_branch
          %344 = sbr.rel (%p342) target = $region56
        $region55: #{tpu_custom_call.1} parent=39 // pred_region
          %v345 = vld [vmem:[%s286] sm:$0xff]
          %vm346 = vcmask 261120
          %v347 = vsel %vm346, %v345, 0.0
          %348 = vadd.xlane.f32.xlu0 %v347
          %v349 = vpop.xlane.xlu0 %348
          %v350 = vrcp.pop 32.0
          %v351 = vmul.f32 %v349, %v350
          %v352 = vsub.f32 %v345, %v351
          %v353 = vmul.f32 %v352, %v352
          %v354 = vsel %vm346, %v353, 0.0
          %355 = vadd.xlane.f32.xlu0 %v354
          %v356 = vpop.xlane.xlu0 %355
          %v357 = vmul.f32 %v356, %v350
          %v358 = vadd.f32 %v357, 1e-05
          %v359 = vrsqrt.pop %v358
          %v360 = vmul.f32 %v352, %v359
          %v361 = vmul.f32 %v360, 0.17677669
          %362 = vst.msk [vmem:[#allocation2] sm:$0xff] %vm346, %v361
          %vm363 = vcmask 7168
          %364 = vst.msk [vmem:[#allocation3] sm:$0xff] %vm363, -inf
          %365 = vst.msk [vmem:[#allocation4] sm:$0xff] %vm363, 0.0
          %366 = vst.msk [vmem:[#allocation5] sm:$0xff] %vm346, 0.0
        $region56: #{tpu_custom_call.1} parent=39 // pred_fallthru
          _
        %v367 = vld [vmem:[%s295] sm:$0xff]
        %vm368 = vcmask 261120
        %v369 = vsel %vm368, %v367, 0.0
        %370 = vadd.xlane.f32.xlu0 %v369
        %v371 = vpop.xlane.xlu0 %370
        %v372 = vrcp.pop 32.0
        %v373 = vmul.f32 %v371, %v372
        %v374 = vsub.f32 %v367, %v373
        %v375 = vmul.f32 %v374, %v374
        %v376 = vsel %vm368, %v375, 0.0
        %377 = vadd.xlane.f32.xlu0 %v376
        %v378 = vpop.xlane.xlu0 %377
        %v379 = vmul.f32 %v378, %v372
        %v380 = vadd.f32 %v379, 1e-05
        %v381 = vrsqrt.pop %v380
        %v382 = vmul.f32 %v374, %v381
        %v383 = vld [vmem:[%s304] sm:$0xff]
        %v384 = vsel %vm368, %v383, 0.0
        %385 = vadd.xlane.f32.xlu0 %v384
        %v386 = vpop.xlane.xlu0 %385
        %v387 = vmul.f32 %v386, %v372
        %v388 = vsub.f32 %v383, %v387
        %v389 = vmul.f32 %v388, %v388
        %v390 = vsel %vm368, %v389, 0.0
        %391 = vadd.xlane.f32.xlu0 %v390
        %v392 = vpop.xlane.xlu0 %391
        %v393 = vmul.f32 %v392, %v372
        %v394 = vadd.f32 %v393, 1e-05
        %v395 = vrsqrt.pop %v394
        %v396 = vmul.f32 %v388, %v395
        %v397 = vld [vmem:[#allocation2] sm:$0xff]
        %v399 = vsel %vm368, %v397, 0
        %v402 = vsel %vm368, %v382, 0
        %404 = vmatprep.subr.mxu0 0.0
        %405 = vmatpush1.xpose.msra.mxu0 0.0
        %406 = vmatprep.subr.mxu0 0.0
        %407 = vmatpush1.xpose.msra.mxu0 0.0
        %408 = vmatprep.subr.mxu0 0.0
        %409 = vmatpush1.xpose.msra.mxu0 0.0
        %410 = vmatprep.subr.mxu0 0.0
        %411 = vmatpush1.xpose.msra.mxu0 0.0
        %412 = vmatprep.subr.mxu0 0.0
        %413 = vmatpush1.xpose.msra.mxu0 0.0
        %414 = vmatprep.subr.mxu0 0.0
        %415 = vmatpush1.xpose.msra.mxu0 0.0
        %416 = vmatprep.subr.mxu0 0.0
        %417 = vmatpush1.xpose.msra.mxu0 0.0
        %418 = vmatprep.subr.mxu0 0.0
        %419 = vmatpush1.xpose.msra.mxu0 0.0
        %420 = vmatprep.subr.mxu0 0.0
        %421 = vmatpush1.xpose.msra.mxu0 0.0
        %422 = vmatprep.subr.mxu0 0.0
        %423 = vmatpush1.xpose.msra.mxu0 0.0
        %424 = vmatprep.subr.mxu0 0.0
        %425 = vmatpush1.xpose.msra.mxu0 0.0
        %426 = vmatprep.subr.mxu0 0.0
        %427 = vmatpush1.xpose.msra.mxu0 0.0
        %428 = vmatprep.subr.mxu0 0.0
        %429 = vmatpush1.xpose.msra.mxu0 0.0
        %430 = vmatprep.subr.mxu0 0.0
        %431 = vmatpush1.xpose.msra.mxu0 0.0
        %432 = vmatprep.subr.mxu0 0.0
        %433 = vmatpush1.xpose.msra.mxu0 0.0
        %434 = vmatprep.subr.mxu0 0.0
        %435 = vmatpush1.xpose.msra.mxu0 %v402
        %436 = vmatprep.subr.mxu0 0.0
        %437 = vmatpush2.xpose.msra.mxu0 0.0
        %438 = vmatprep.subr.mxu0 0.0
        %439 = vmatpush2.xpose.msra.mxu0 0.0
        %440 = vmatprep.subr.mxu0 0.0
        %441 = vmatpush2.xpose.msra.mxu0 0.0
        %442 = vmatprep.subr.mxu0 0.0
        %443 = vmatpush2.xpose.msra.mxu0 0.0
        %444 = vmatprep.subr.mxu0 0.0
        %445 = vmatpush2.xpose.msra.mxu0 0.0
        %446 = vmatprep.subr.mxu0 0.0
        %447 = vmatpush2.xpose.msra.mxu0 0.0
        %448 = vmatprep.subr.mxu0 0.0
        %449 = vmatpush2.xpose.msra.mxu0 0.0
        %450 = vmatprep.subr.mxu0 0.0
        %451 = vmatpush2.xpose.msra.mxu0 0.0
        %452 = vmatprep.subr.mxu0 0.0
        %453 = vmatpush2.xpose.msra.mxu0 0.0
        %454 = vmatprep.subr.mxu0 0.0
        %455 = vmatpush2.xpose.msra.mxu0 0.0
        %456 = vmatprep.subr.mxu0 0.0
        %457 = vmatpush2.xpose.msra.mxu0 0.0
        %458 = vmatprep.subr.mxu0 0.0
        %459 = vmatpush2.xpose.msra.mxu0 0.0
        %460 = vmatprep.subr.mxu0 0.0
        %461 = vmatpush2.xpose.msra.mxu0 0.0
        %462 = vmatprep.subr.mxu0 0.0
        %463 = vmatpush2.xpose.msra.mxu0 0.0
        %464 = vmatprep.subr.mxu0 0.0
        %465 = vmatpush2.xpose.msra.mxu0 0.0
        %466 = vmatprep.subr.mxu0 0.0
        %467 = vmatpush2.xpose.msra.mxu0 0.0
        %468 = vmatprep.mubr.f32.mxu0 0.0
        %469 = vmatmul.mubr.f32.gmra.mxu0 %v399
        %v470 = vpop.f32.mrf.mxu0
        %v471 = vadd.f32 0.0, %v470
        %v472 = vpop.f32.mrf.mxu0
        %473 = vdwg.mxu0
        %v474 = vld [vmem:[#allocation3] sm:$0xff]
        %vm475 = vcmask 64512
        %v476 = vsel %vm475, %v471, -inf
        %477 = vmax.xlane.f32.xlu0 %v476
        %v478 = vpop.xlane.xlu0 %477
        %v479 = vmax.f32 %v474, %v478
        %v480 = vsub.f32 %v474, %v479
        %v481 = vmul.f32 %v480, 1.442695
        %v482 = vpow.pop %v481
        %484 = vset.pattern.permute.xlu0 0
        %485 = vperm.xlu0 %484, %v479
        %v486 = vpop.permute.xlu0 %485
        %v488 = vsub.f32 %v471, %v486
        %v489 = vmul.f32 %v488, 1.442695
        %v490 = vpow.pop %v489
        %v491 = vld [vmem:[#allocation4] sm:$0xff]
        %v492 = vmul.f32 %v482, %v491
        %v493 = vsel %vm475, %v490, 0.0
        %494 = vadd.xlane.f32.xlu0 %v493
        %v495 = vpop.xlane.xlu0 %494
        %v496 = vadd.f32 %v492, %v495
        %vm497 = vcmask 7168
        %498 = vst.msk [vmem:[#allocation4] sm:$0xff] %vm497, %v496
        %v499 = vld [vmem:[#allocation5] sm:$0xff]
        %501 = vset.pattern.permute.xlu0 0
        %502 = vperm.xlu0 %501, %v482
        %v503 = vpop.permute.xlu0 %502
        %v505 = vmul.f32 %v503, %v499
        %v507 = vsel %vm475, %v490, 0
        %509 = vmatprep.subr.mxu0 0.0
        %510 = vmatpush1.msra.mxu0 0.0
        %511 = vmatprep.subr.mxu0 0.0
        %512 = vmatpush1.msra.mxu0 0.0
        %513 = vmatprep.subr.mxu0 0.0
        %514 = vmatpush1.msra.mxu0 0.0
        %515 = vmatprep.subr.mxu0 0.0
        %516 = vmatpush1.msra.mxu0 0.0
        %517 = vmatprep.subr.mxu0 0.0
        %518 = vmatpush1.msra.mxu0 0.0
        %519 = vmatprep.subr.mxu0 0.0
        %520 = vmatpush1.msra.mxu0 0.0
        %521 = vmatprep.subr.mxu0 0.0
        %522 = vmatpush1.msra.mxu0 0.0
        %523 = vmatprep.subr.mxu0 0.0
        %524 = vmatpush1.msra.mxu0 0.0
        %525 = vmatprep.subr.mxu0 0.0
        %526 = vmatpush1.msra.mxu0 0.0
        %527 = vmatprep.subr.mxu0 0.0
        %528 = vmatpush1.msra.mxu0 0.0
        %529 = vmatprep.subr.mxu0 0.0
        %530 = vmatpush1.msra.mxu0 0.0
        %531 = vmatprep.subr.mxu0 0.0
        %532 = vmatpush1.msra.mxu0 0.0
        %533 = vmatprep.subr.mxu0 0.0
        %534 = vmatpush1.msra.mxu0 0.0
        %535 = vmatprep.subr.mxu0 0.0
        %536 = vmatpush1.msra.mxu0 0.0
        %537 = vmatprep.subr.mxu0 0.0
        %538 = vmatpush1.msra.mxu0 0.0
        %539 = vmatprep.subr.mxu0 0.0
        %540 = vmatpush1.msra.mxu0 %v396
        %541 = vmatprep.subr.mxu0 0.0
        %542 = vmatpush2.msra.mxu0 0.0
        %543 = vmatprep.subr.mxu0 0.0
        %544 = vmatpush2.msra.mxu0 0.0
        %545 = vmatprep.subr.mxu0 0.0
        %546 = vmatpush2.msra.mxu0 0.0
        %547 = vmatprep.subr.mxu0 0.0
        %548 = vmatpush2.msra.mxu0 0.0
        %549 = vmatprep.subr.mxu0 0.0
        %550 = vmatpush2.msra.mxu0 0.0
        %551 = vmatprep.subr.mxu0 0.0
        %552 = vmatpush2.msra.mxu0 0.0
        %553 = vmatprep.subr.mxu0 0.0
        %554 = vmatpush2.msra.mxu0 0.0
        %555 = vmatprep.subr.mxu0 0.0
        %556 = vmatpush2.msra.mxu0 0.0
        %557 = vmatprep.subr.mxu0 0.0
        %558 = vmatpush2.msra.mxu0 0.0
        %559 = vmatprep.subr.mxu0 0.0
        %560 = vmatpush2.msra.mxu0 0.0
        %561 = vmatprep.subr.mxu0 0.0
        %562 = vmatpush2.msra.mxu0 0.0
        %563 = vmatprep.subr.mxu0 0.0
        %564 = vmatpush2.msra.mxu0 0.0
        %565 = vmatprep.subr.mxu0 0.0
        %566 = vmatpush2.msra.mxu0 0.0
        %567 = vmatprep.subr.mxu0 0.0
        %568 = vmatpush2.msra.mxu0 0.0
        %569 = vmatprep.subr.mxu0 0.0
        %570 = vmatpush2.msra.mxu0 0.0
        %571 = vmatprep.subr.mxu0 0.0
        %572 = vmatpush2.msra.mxu0 0.0
        %573 = vmatprep.mubr.f32.mxu0 0.0
        %574 = vmatmul.mubr.f32.gmra.mxu0 %v507
        %v575 = vpop.f32.mrf.mxu0
        %v576 = vadd.f32 0.0, %v575
        %v577 = vpop.f32.mrf.mxu0
        %578 = vdwg.mxu0
        %v579 = vadd.f32 %v505, %v576
        %580 = vst.msk [vmem:[#allocation5] sm:$0xff] %vm368, %v579
        %581 = vst.msk [vmem:[#allocation3] sm:$0xff] %vm497, %v479
        // Predicated region
        $region57: #{tpu_custom_call.1} parent=39 // pred_check
          %p582 = pneg %p341
        $region58: #{tpu_custom_call.1} parent=39 // pred_check_branch
          %584 = sbr.rel (%p582) target = $region60
        $region59: #{tpu_custom_call.1} parent=39 // pred_region
          %v585 = vld [vmem:[#allocation4] sm:$0xff]
          %v586 = vrcp.pop %v585
          %v587 = vld [vmem:[#allocation5] sm:$0xff]
          %589 = vset.pattern.permute.xlu0 0
          %590 = vperm.xlu0 %589, %v586
          %v591 = vpop.permute.xlu0 %590
          %v593 = vmul.f32 %v587, %v591
          %594 = vst.msk [vmem:[%s340] sm:$0xff] %vm368, %v593
        $region60: #{tpu_custom_call.1} parent=39 // pred_fallthru
          _
        %s595 = sand.u32 %s180, 1
        %s596 = scalar_lea.sflag [#allocation8], %s595
        %s597 = sand.u32 %s180, 1
        %s598 = smul.addr %s597, 8
        %s599 = scalar_lea.vmem [#allocation12], %s598
        // Predicated region
        $region61: #{tpu_custom_call.1} parent=39 // pred_check
          %p600 = pneg %p190
        $region62: #{tpu_custom_call.1} parent=39 // pred_check_branch
          %602 = sbr.rel (%p600) target = $region64
        $region63: #{tpu_custom_call.1} parent=39 // pred_region
          %s604 = ssub.s32 128, 128
          %605 = vsyncadd %s596, %s604
          %s606 = sadd.s32 %s31, %s30
          %s607 = smul.addr %s606, 128
          %s608 = scalar_lea.hbm %s5, %s607
          %s610 = sshll.u32 %s599, 4
          %s611 = int_to_ptr.vmem [resolvable:$true] %s610
          %613 = dma.vmem_to_hbm [thread:$0]  %s611, 128, %s608, %s596
        $region64: #{tpu_custom_call.1} parent=39 // pred_fallthru
          _
      $region40: #{tpu_custom_call.1} parent=5 // pred_fallthru
        _
      %p614 = scmp.le.s32.totalorder 2, %s20
      // Predicated region
      $region65: #{tpu_custom_call.1} parent=5 // pred_check
        %p615 = pneg %p614
      $region66: #{tpu_custom_call.1} parent=5 // pred_check_branch
        %617 = sbr.rel (%p615) target = $region68
      $region67: #{tpu_custom_call.1} parent=5 // pred_region
        %s618 = ssub.s32 %s20, 2
        // Predicated region
        $region69: #{tpu_custom_call.1} parent=67 // pred_check
          %p619 = pneg %p196
        $region70: #{tpu_custom_call.1} parent=67 // pred_check_branch
          %621 = sbr.rel (%p619) target = $region72
        $region71: #{tpu_custom_call.1} parent=67 // pred_region
          %s622 = sand.u32 %s181, 1
          %s623 = scalar_lea.sflag [#allocation8], %s622
          %s624 = sand.u32 %s181, 1
          %s625 = smul.addr %s624, 8
          %s626 = scalar_lea.vmem [#allocation12], %s625
          %627 = dma.done %s623, 128
        $region72: #{tpu_custom_call.1} parent=67 // pred_fallthru
          _
      $region68: #{tpu_custom_call.1} parent=5 // pred_fallthru
        _
    $region6: #{tpu_custom_call.1} parent=1 // loop_footer
      %s24 = sadd.s32 1, %s20
    $region7: #{tpu_custom_call.1} parent=1 // loop_footer_branch
      %19 = sbr.rel target = $region3
    $region8: #{tpu_custom_call.1} parent=1 // loop_exit
      _
    %628 = vsyncpa [#allocation7], 1
    %s629 = scalar_lea.sflag [#allocation7], 1
    %630 = vsyncpa %s629, 1
    %631 = vsyncpa [#allocation10], 1
    %s632 = scalar_lea.sflag [#allocation10], 1
    %633 = vsyncpa %s632, 1
    %634 = vsyncpa [#allocation8], 1
    %s635 = scalar_lea.sflag [#allocation8], 1
    %636 = vsyncpa %s635, 1

</llo_original>
